<compile_context>
chip_gen: v5e
topology: v5e:2x2
jax: 0.10.0
libtpu: 0.0.40
codegen_flags: <defaults>
</compile_context>

<pallas_src>
import jax
import jax.numpy as jnp
from jax.experimental import pallas as pl
from jax.experimental.pallas import tpu as pltpu


# ---------------- Pallas kernels ----------------

def _xstats_kernel(xt_ref, gram_ref, sum_ref):
    # One pass over X^T (Cin, M): accumulate Gram = X X^T (Cin,Cin) and row sums
    # (Cin,1) across grid steps ("arbitrary" axis, resident output accumulators).
    @pl.when(pl.program_id(0) == 0)
    def _():
        gram_ref[...] = jnp.zeros_like(gram_ref)
        sum_ref[...] = jnp.zeros_like(sum_ref)

    xt = xt_ref[...]                                       # (Cin, tm)
    # Full-f32 Gram on the VPU (Cin is tiny) + lane reduction.
    gram_ref[...] += jnp.sum(xt[:, None, :] * xt[None, :, :], axis=-1)
    sum_ref[...] += jnp.sum(xt, axis=-1, keepdims=True)


def _deconv_bn_relu_kernel(wt_ref, scale_ref, shift_ref, xt_ref, o_ref):
    # Fused: (Ncols, Cin) @ (Cin, tm) on MXU, then per-row BN affine + ReLU on VPU.
    # Output block is (Ncols, tm): lane-dense stores.
    y = jnp.dot(wt_ref[...], xt_ref[...], preferred_element_type=jnp.float32)
    o_ref[...] = jnp.maximum(y * scale_ref[...] + shift_ref[...], 0.0).astype(o_ref.dtype)


# ---------------- wrapper ----------------

def _round_up(x, m):
    return ((x + m - 1) // m) * m


def deconv2d_block(x, weight, bias, gamma, beta, *, kernel, stride,
                   eps=1e-5, tm=8192):
    """ConvTranspose2d(stride==kernel, padding=0) + BatchNorm2d(train) + ReLU."""
    assert stride == kernel, "this Pallas impl assumes stride == kernel, padding == 0"
    del bias  # absorbed exactly by train-mode BatchNorm (mean subtraction).

    N, Cin, H, W = x.shape
    Cin_w, Cout, kH, kW = weight.shape
    assert Cin == Cin_w and kH == kernel and kW == kernel
    k2 = kH * kW
    M = N * H * W
    Ncols = Cout * k2

    # Tile size: big blocks to amortize per-step overhead; pad M instead of asserting.
    tm_eff = min(_round_up(M, 128), _round_up(tm, 128))
    Mpad = _round_up(M, tm_eff)
    grid = (Mpad // tm_eff,)

    # ---- glue: transposed, lane-dense layouts ----
    # X^T: (Cin, M), column index = flattened (n, h, w). Zero-pad columns to Mpad.
    xT = jnp.transpose(x, (1, 0, 2, 3)).reshape(Cin, M).astype(jnp.float32)
    if Mpad != M:
        xT = jnp.pad(xT, ((0, 0), (0, Mpad - M)))
    # W^T: (Ncols, Cin), row index = (cout, kh, kw).
    wT = jnp.transpose(weight.astype(jnp.float32), (1, 2, 3, 0)).reshape(Ncols, Cin)

    # ---- kernel 1: tiny reduction over X for analytic BN statistics ----
    gram, xsum = pl.pallas_call(
        _xstats_kernel,
        out_shape=(jax.ShapeDtypeStruct((Cin, Cin), jnp.float32),
                   jax.ShapeDtypeStruct((Cin, 1), jnp.float32)),
        grid_spec=pltpu.PrefetchScalarGridSpec(
            num_scalar_prefetch=0,
            grid=grid,
            in_specs=[pl.BlockSpec((Cin, tm_eff), lambda i: (0, i))],
            out_specs=(pl.BlockSpec((Cin, Cin), lambda i: (0, 0)),
                       pl.BlockSpec((Cin, 1), lambda i: (0, 0)))),
        compiler_params=pltpu.CompilerParams(dimension_semantics=("arbitrary",)),
    )(xT)

    # ---- glue: analytic train-mode BN stats (y = X @ W, bias absorbed) ----
    countf = float(M * k2)                              # elements per out-channel
    x_mean = xsum[:, 0] / float(M)                      # (Cin,)
    gram_c = gram - float(M) * jnp.outer(x_mean, x_mean)          # Xc^T Xc (centered)
    col_mean = jnp.einsum('nc,c->n', wT, x_mean,
                          precision=jax.lax.Precision.HIGHEST)    # (Ncols,)
    quad = jnp.einsum('nc,cd,nd->n', wT, gram_c, wT,
                      precision=jax.lax.Precision.HIGHEST)        # sum_rows (y_j - col_mean_j)^2
    ch_col_mean = col_mean.reshape(Cout, k2)
    mean = ch_col_mean.mean(axis=1)                               # (Cout,)
    var = (quad.reshape(Cout, k2).sum(axis=1) / countf
           + ((ch_col_mean - mean[:, None]) ** 2).mean(axis=1))   # biased batch var
    var = jnp.maximum(var, 0.0)
    scale = gamma.astype(jnp.float32) / jnp.sqrt(var + eps)
    shift = beta.astype(jnp.float32) - mean * scale
    scale_rows = jnp.repeat(scale, k2).reshape(Ncols, 1)
    shift_rows = jnp.repeat(shift, k2).reshape(Ncols, 1)

    # ---- kernel 2: fused ConvTranspose matmul + BatchNorm affine + ReLU ----
    yT = pl.pallas_call(
        _deconv_bn_relu_kernel,
        out_shape=jax.ShapeDtypeStruct((Ncols, Mpad), jnp.float32),
        grid_spec=pltpu.PrefetchScalarGridSpec(
            num_scalar_prefetch=0,
            grid=grid,
            in_specs=[
                pl.BlockSpec((Ncols, Cin), lambda i: (0, 0)),
                pl.BlockSpec((Ncols, 1), lambda i: (0, 0)),
                pl.BlockSpec((Ncols, 1), lambda i: (0, 0)),
                pl.BlockSpec((Cin, tm_eff), lambda i: (0, i)),
            ],
            out_specs=pl.BlockSpec((Ncols, tm_eff), lambda i: (0, i))),
        compiler_params=pltpu.CompilerParams(dimension_semantics=("parallel",)),
    )(wT, scale_rows, shift_rows, xT)

    # ---- glue: interleave the (kH, kW) patches into NCHW output ----
    out = yT[:, :M].reshape(Cout, kH, kW, N, H, W)
    out = jnp.transpose(out, (3, 0, 4, 1, 5, 2))        # (N, Cout, H, kH, W, kW)
    out = out.reshape(N, Cout, H * kH, W * kW)
    return out


# ---------------- pure-JAX reference (for validation only) ----------------

def _reference(x, weight, bias, gamma, beta, eps=1e-5):
    N, Cin, H, W = x.shape
    _, Cout, kH, kW = weight.shape
    y = jnp.einsum('nchw,cokl->nohkwl', x, weight,
                   precision=jax.lax.Precision.HIGHEST)
    y = y.reshape(N, Cout, H * kH, W * kW) + bias[None, :, None, None]
    mean = y.mean(axis=(0, 2, 3))
    var = y.var(axis=(0, 2, 3))
    yn = (y - mean[None, :, None, None]) / jnp.sqrt(var + eps)[None, :, None, None]
    return jnp.maximum(gamma[None, :, None, None] * yn + beta[None, :, None, None], 0.0)


if __name__ == "__main__":
    key = jax.random.PRNGKey(0)
    N, Cin, Cout, H, W, K = 2, 4, 8, 16, 16, 2

    kx, kw, kb = jax.random.split(key, 3)
    x = jax.random.normal(kx, (N, Cin, H, W), jnp.float32)

    # ConvTranspose2d weight shape: (in_channels, out_channels, kH, kW)
    fan = Cin * K * K
    bound = 1.0 / (fan ** 0.5)
    weight = jax.random.uniform(kw, (Cin, Cout, K, K), jnp.float32, -bound, bound)
    bias = jax.random.uniform(kb, (Cout,), jnp.float32, -bound, bound)

    # BatchNorm2d default affine params.
    gamma = jnp.ones((Cout,), jnp.float32)
    beta = jnp.zeros((Cout,), jnp.float32)

    out = deconv2d_block(x, weight, bias, gamma, beta, kernel=K, stride=K)
    out = jax.block_until_ready(out)
    assert out.shape == (N, Cout, H * K, W * K)
    assert bool(jnp.all(out >= 0.0))  # ReLU sanity

    ref = _reference(x, weight, bias, gamma, beta)
    err = float(jnp.max(jnp.abs(out - ref)))
    assert err < 6e-2, f"max abs err vs reference = {err}"
    print("KERNEL_OK")
</pallas_src>

<mosaic_0001>
module attributes {stable_mosaic.version = 11 : i64} {
  func.func @_xstats_kernel(%arg0: i32, %arg1: memref<4x512xf32, #tpu.memory_space<vmem>>, %arg2: memref<4x4xf32, #tpu.memory_space<vmem>>, %arg3: memref<4x1xf32, #tpu.memory_space<vmem>>) attributes {dimension_semantics = [#tpu.dimension_semantics<arbitrary>], iteration_bounds = array<i64: 1>, scalar_prefetch = 0 : i64, scratch_operands = 0 : i64, tpu.core_type = #tpu.core_type<tc>, window_params = [{transform_indices = @transform_0, window_bounds = array<i64: 4, 512>}, {pipeline_mode = #tpu.pipeline_mode<synchronous>, transform_indices = @transform_1, window_bounds = array<i64: 4, 4>}, {pipeline_mode = #tpu.pipeline_mode<synchronous>, transform_indices = @transform_2, window_bounds = array<i64: 4, 1>}]} {
    %c0_i32 = arith.constant 0 : i32
    %0 = arith.cmpi eq, %arg0, %c0_i32 : i32
    %1 = arith.extui %0 : i1 to i32
    %c0_i32_0 = arith.constant 0 : i32
    %2 = arith.cmpi ne, %1, %c0_i32_0 : i32
    scf.if %2 {
      %cst_11 = arith.constant 0.000000e+00 : f32
      %18 = vector.broadcast %cst_11 : f32 to vector<4x4xf32>
      %c0_12 = arith.constant 0 : index
      %c0_13 = arith.constant 0 : index
      %19 = vector.load %arg2[%c0_12, %c0_13] : memref<4x4xf32, #tpu.memory_space<vmem>>, vector<4x4xf32>
      tpu.vector_store %arg2[%c0_12, %c0_13], %18 {strides = array<i32>} : memref<4x4xf32, #tpu.memory_space<vmem>>, vector<4x4xf32>,
      %cst_14 = arith.constant 0.000000e+00 : f32
      %20 = vector.broadcast %cst_14 : f32 to vector<4x1xf32>
      %c0_15 = arith.constant 0 : index
      %c0_16 = arith.constant 0 : index
      %21 = vector.load %arg3[%c0_15, %c0_16] : memref<4x1xf32, #tpu.memory_space<vmem>>, vector<4x1xf32>
      tpu.vector_store %arg3[%c0_15, %c0_16], %20 {strides = array<i32>} : memref<4x1xf32, #tpu.memory_space<vmem>>, vector<4x1xf32>,
    } else {
    }
    %c0 = arith.constant 0 : index
    %c0_1 = arith.constant 0 : index
    %3 = vector.load %arg1[%c0, %c0_1] : memref<4x512xf32, #tpu.memory_space<vmem>>, vector<4x512xf32>
    %c0_2 = arith.constant 0 : index
    %c0_3 = arith.constant 0 : index
    %4 = vector.load %arg2[%c0_2, %c0_3] : memref<4x4xf32, #tpu.memory_space<vmem>>, vector<4x4xf32>
    %5 = vector.shape_cast %3 : vector<4x512xf32> to vector<4x1x512xf32>
    %6 = vector.shape_cast %3 : vector<4x512xf32> to vector<1x4x512xf32>
    %7 = vector.broadcast %5 : vector<4x1x512xf32> to vector<4x4x512xf32>
    %8 = vector.broadcast %6 : vector<1x4x512xf32> to vector<4x4x512xf32>
    %9 = arith.mulf %7, %8 : vector<4x4x512xf32>
    %cst = arith.constant dense<0.000000e+00> : vector<4x4xf32>
    %10 = vector.multi_reduction <add>, %9, %cst [2] : vector<4x4x512xf32> to vector<4x4xf32>
    %11 = arith.addf %4, %10 : vector<4x4xf32>
    %c0_4 = arith.constant 0 : index
    %c0_5 = arith.constant 0 : index
    %12 = vector.load %arg2[%c0_4, %c0_5] : memref<4x4xf32, #tpu.memory_space<vmem>>, vector<4x4xf32>
    tpu.vector_store %arg2[%c0_4, %c0_5], %11 {strides = array<i32>} : memref<4x4xf32, #tpu.memory_space<vmem>>, vector<4x4xf32>,
    %c0_6 = arith.constant 0 : index
    %c0_7 = arith.constant 0 : index
    %13 = vector.load %arg3[%c0_6, %c0_7] : memref<4x1xf32, #tpu.memory_space<vmem>>, vector<4x1xf32>
    %cst_8 = arith.constant dense<0.000000e+00> : vector<4xf32>
    %14 = vector.multi_reduction <add>, %3, %cst_8 [1] : vector<4x512xf32> to vector<4xf32>
    %15 = vector.shape_cast %14 : vector<4xf32> to vector<4x1xf32>
    %16 = arith.addf %13, %15 : vector<4x1xf32>
    %c0_9 = arith.constant 0 : index
    %c0_10 = arith.constant 0 : index
    %17 = vector.load %arg3[%c0_9, %c0_10] : memref<4x1xf32, #tpu.memory_space<vmem>>, vector<4x1xf32>
    tpu.vector_store %arg3[%c0_9, %c0_10], %16 {strides = array<i32>} : memref<4x1xf32, #tpu.memory_space<vmem>>, vector<4x1xf32>,
    return
  }
  func.func @transform_0(%arg0: i32) -> (i32, i32) {
    %c0_i32 = arith.constant 0 : i32
    %c0_i32_0 = arith.constant 0 : i32
    return %c0_i32, %arg0 : i32, i32
  }
  func.func @transform_1(%arg0: i32) -> (i32, i32) {
    %c0_i32 = arith.constant 0 : i32
    %c0_i32_0 = arith.constant 0 : i32
    %c0_i32_1 = arith.constant 0 : i32
    return %c0_i32, %c0_i32_0 : i32, i32
  }
  func.func @transform_2(%arg0: i32) -> (i32, i32) {
    %c0_i32 = arith.constant 0 : i32
    %c0_i32_0 = arith.constant 0 : i32
    %c0_i32_1 = arith.constant 0 : i32
    return %c0_i32, %c0_i32_0 : i32, i32
  }
}

</mosaic_0001>

<llo_original>
// kernel: tpu_custom_call.1
$region0: #{tpu_custom_call.1}
  #allocation0 [shape = 'u32[]', space=smem, size = 0x4, offset = 0x4, fixed_abs, tag = 'smem constant byte address 0x4 - core index']
  #allocation1 [shape = 'u32[72,128]{1,0:T(1,128)}', space=vmem, size = 0x9000, scoped, tag = 'internal scratch']
  %s0 = inlined_call_operand.hbm [shape: f32[4,512], index: 0, kind: input, shape index: {}]
  %s1 = inlined_call_operand.hbm [shape: f32[4,4], index: 1, kind: output, shape index: {0}]
  %s2 = inlined_call_operand.vmem [shape: f32[4,1], index: 2, kind: output, shape index: {1}]
  %3 = xla_tuple %s1, %s2
  %s4 = sld [smem:[#allocation0]]
  $region30: #{tpu_custom_call.1} parent=0
    _
  %s6 = ssub.s32 1, %s4
  %s7 = scalar_select 0, %s6, %s4
  $region1: #{tpu_custom_call.1} parent=0
    #allocation2 [shape = 'u8[8192]{0}', space=vmem, size = 0x2000, scoped, tag = 'input window, operand 0, single buffered']
    #allocation3 [shape = 's32[1]{0}', space=sflag, size = 0x4, scoped, tag = 'scoped memory for tpu_custom_call.1']
    #allocation4 [shape = 's32[1]{0}', space=sflag, size = 0x4, scoped, tag = 'scoped memory for tpu_custom_call.1']
    #allocation5 [shape = 'u8[2048]{0}', space=vmem, size = 0x800, scoped, tag = 'output window, operand 0, single buffered']
    %8 = vsyncpa [#allocation3], 0
    %9 = vsyncpa [#allocation4], 0
    // Predicated region
    $region2: #{tpu_custom_call.1} parent=1 // pred_check
      _
    $region3: #{tpu_custom_call.1} parent=1 // pred_check_branch
      %11 = sbr.rel (0) target = $region5
    $region4: #{tpu_custom_call.1} parent=1 // pred_region
      %13 = vsyncadd [#allocation3], 0
      %s15 = sshll.u32 %s0, 4
      %s16 = int_to_ptr.hbm [resolvable:$true] %s15
      %s17 = sshll.u32 [#allocation2], 4
      %s18 = int_to_ptr.vmem [resolvable:$true] %s17
      %20 = dma.hbm_to_vmem [thread:$0]  %s16, 256, %s18, [#allocation3]
    $region5: #{tpu_custom_call.1} parent=1 // pred_fallthru
      _
    // Predicated region
    $region6: #{tpu_custom_call.1} parent=1 // pred_check
      _
    $region7: #{tpu_custom_call.1} parent=1 // pred_check_branch
      %22 = sbr.rel (0) target = $region9
    $region8: #{tpu_custom_call.1} parent=1 // pred_region
      %24 = dma.done [#allocation3], 256
    $region9: #{tpu_custom_call.1} parent=1 // pred_fallthru
      _
    %p25 = scmp.eq.s32.totalorder 0, 0
    // Predicated region
    $region10: #{tpu_custom_call.1} parent=1 // pred_check
      %p26 = pneg %p25
    $region11: #{tpu_custom_call.1} parent=1 // pred_check_branch
      %28 = sbr.rel (%p26) target = $region13
    $region12: #{tpu_custom_call.1} parent=1 // pred_region
      %vm29 = vcmask 27648
      %30 = vst.msk [vmem:[#allocation5] sm:$0xf] %vm29, 0.0
      %vm31 = vcmask 3072
      %32 = vst.msk [vmem:[%s2] sm:$0xf] %vm31, 0.0
    $region13: #{tpu_custom_call.1} parent=1 // pred_fallthru
      _
    %v33 = vld [vmem:[#allocation2] sm:$0xff]
    %v34 = vld [vmem:[#allocation2 + $0x8] sm:$0xff]
    %v35 = vld [vmem:[#allocation5] sm:$0xf]
    %v38 = vrot.slane %v33, 3
    %v39 = vrot.slane %v34, 6
    %v40 = vrot.slane %v34, 1
    %vm41 = vcmask 1040384
    %v42 = vsel %vm41, %v33, %v38
    %vm43 = vcmask 1042434
    %v44 = vsel %vm43, %v39, %v40
    %vm45 = vcmask 1041408
    %v46 = vsel %vm45, %v42, %v44
    %vm47 = vcmask 1041409
    %v48 = vsel %vm47, %v33, %v38
    %vm49 = vcmask 1043459
    %v50 = vsel %vm49, %v39, %v40
    %vm51 = vcmask 1042433
    %v52 = vsel %vm51, %v48, %v50
    %v53 = vrot.slane %v52, 1
    %v54 = vsel %vm43, %v33, %v38
    %vm55 = vcmask 1044484
    %v56 = vsel %vm55, %v39, %v40
    %vm57 = vcmask 1043458
    %v58 = vsel %vm57, %v54, %v56
    %v59 = vrot.slane %v58, 2
    %v60 = vsel %vm49, %v33, %v38
    %vm61 = vcmask 1045509
    %v62 = vsel %vm61, %v39, %v40
    %vm63 = vcmask 1044483
    %v64 = vsel %vm63, %v60, %v62
    %v65 = vrot.slane %v64, 3
    %v66 = vperm.slane %v46, 0
    %v67 = vperm.slane %v46, 1
    %v68 = vperm.slane %v46, 2
    %v69 = vperm.slane %v46, 3
    %v70 = vperm.slane %v53, 0
    %v71 = vperm.slane %v53, 1
    %v72 = vperm.slane %v53, 2
    %v73 = vperm.slane %v53, 3
    %v74 = vperm.slane %v59, 0
    %v75 = vperm.slane %v59, 1
    %v76 = vperm.slane %v59, 2
    %v77 = vperm.slane %v59, 3
    %v78 = vperm.slane %v65, 0
    %v79 = vperm.slane %v65, 1
    %v80 = vperm.slane %v65, 2
    %v81 = vperm.slane %v65, 3
    %98 = vst [vmem:[#allocation1] ss:$2 sm:$0xff] %v33
    %s99 = scalar_lea.vmem [#allocation1], 16
    %100 = vst [vmem:[%s99] ss:$2 sm:$0xff] %v34
    %v101 = vld.sshfl [vmem:[#allocation1] sm:$0xff pattern:$0x75316420]
    %v102 = vld.sshfl [vmem:[#allocation1 + $0x8] sm:$0xff pattern:$0x75316420]
    %v103 = vld.sshfl [vmem:[#allocation1 + $0x10] sm:$0xff pattern:$0x75316420]
    %v104 = vld.sshfl [vmem:[#allocation1 + $0x18] sm:$0xff pattern:$0x75316420]
    %s105 = scalar_lea.vmem [#allocation1], 32
    %106 = vst [vmem:[%s105] ss:$2 sm:$0xff] %v33
    %s107 = scalar_lea.vmem [#allocation1], 48
    %108 = vst [vmem:[%s107] ss:$2 sm:$0xff] %v34
    %v109 = vld.sshfl [vmem:[#allocation1 + $0x20] sm:$0xff pattern:$0x75316420]
    %v110 = vld.sshfl [vmem:[#allocation1 + $0x28] sm:$0xff pattern:$0x75316420]
    %v111 = vld.sshfl [vmem:[#allocation1 + $0x30] sm:$0xff pattern:$0x75316420]
    %v112 = vld.sshfl [vmem:[#allocation1 + $0x38] sm:$0xff pattern:$0x75316420]
    %113 = vst [vmem:[#allocation1] ss:$2 sm:$0xff] %v33
    %114 = vst [vmem:[%s99] ss:$2 sm:$0xff] %v34
    %v115 = vld.sshfl [vmem:[#allocation1] sm:$0xff pattern:$0x75316420]
    %v116 = vld.sshfl [vmem:[#allocation1 + $0x8] sm:$0xff pattern:$0x75316420]
    %v117 = vld.sshfl [vmem:[#allocation1 + $0x10] sm:$0xff pattern:$0x75316420]
    %v118 = vld.sshfl [vmem:[#allocation1 + $0x18] sm:$0xff pattern:$0x75316420]
    %119 = vst [vmem:[%s105] ss:$2 sm:$0xff] %v33
    %120 = vst [vmem:[%s107] ss:$2 sm:$0xff] %v34
    %v121 = vld.sshfl [vmem:[#allocation1 + $0x20] sm:$0xff pattern:$0x75316420]
    %v122 = vld.sshfl [vmem:[#allocation1 + $0x28] sm:$0xff pattern:$0x75316420]
    %v123 = vld.sshfl [vmem:[#allocation1 + $0x30] sm:$0xff pattern:$0x75316420]
    %v124 = vld.sshfl [vmem:[#allocation1 + $0x38] sm:$0xff pattern:$0x75316420]
    %v141 = vmul.f32 %v66, %v101
    %v142 = vmul.f32 %v67, %v102
    %v143 = vmul.f32 %v68, %v103
    %v144 = vmul.f32 %v69, %v104
    %v145 = vmul.f32 %v70, %v109
    %v146 = vmul.f32 %v71, %v110
    %v147 = vmul.f32 %v72, %v111
    %v148 = vmul.f32 %v73, %v112
    %v149 = vmul.f32 %v74, %v115
    %v150 = vmul.f32 %v75, %v116
    %v151 = vmul.f32 %v76, %v117
    %v152 = vmul.f32 %v77, %v118
    %v153 = vmul.f32 %v78, %v121
    %v154 = vmul.f32 %v79, %v122
    %v155 = vmul.f32 %v80, %v123
    %v156 = vmul.f32 %v81, %v124
    %vm157 = vcmask 1043456
    %v158 = vsel %vm157, %v141, 0.0
    %v159 = vsel %vm157, %v142, 0.0
    %v160 = vadd.f32 %v158, %v159
    %v161 = vsel %vm157, %v143, 0.0
    %v162 = vadd.f32 %v160, %v161
    %v163 = vsel %vm157, %v144, 0.0
    %v164 = vadd.f32 %v162, %v163
    %165 = vadd.xlane.f32.xlu0 %v164
    %v166 = vpop.xlane.xlu0 %165
    %v167 = vsel %vm157, %v145, 0.0
    %v168 = vsel %vm157, %v146, 0.0
    %v169 = vadd.f32 %v167, %v168
    %v170 = vsel %vm157, %v147, 0.0
    %v171 = vadd.f32 %v169, %v170
    %v172 = vsel %vm157, %v148, 0.0
    %v173 = vadd.f32 %v171, %v172
    %174 = vadd.xlane.f32.xlu0 %v173
    %v175 = vpop.xlane.xlu0 %174
    %v176 = vsel %vm157, %v149, 0.0
    %v177 = vsel %vm157, %v150, 0.0
    %v178 = vadd.f32 %v176, %v177
    %v179 = vsel %vm157, %v151, 0.0
    %v180 = vadd.f32 %v178, %v179
    %v181 = vsel %vm157, %v152, 0.0
    %v182 = vadd.f32 %v180, %v181
    %183 = vadd.xlane.f32.xlu0 %v182
    %v184 = vpop.xlane.xlu0 %183
    %v185 = vsel %vm157, %v153, 0.0
    %v186 = vsel %vm157, %v154, 0.0
    %v187 = vadd.f32 %v185, %v186
    %v188 = vsel %vm157, %v155, 0.0
    %v189 = vadd.f32 %v187, %v188
    %v190 = vsel %vm157, %v156, 0.0
    %v191 = vadd.f32 %v189, %v190
    %192 = vadd.xlane.f32.xlu0 %v191
    %v193 = vpop.xlane.xlu0 %192
    %v198 = vlaneseq
    %v199 = vand.u32 %v198, 127
    %v200 = vperm.slane %v166, %v199
    %v201 = vperm.slane %v175, %v199
    %v202 = vperm.slane %v184, %v199
    %v203 = vperm.slane %v193, %v199
    %v204 = vsel %vm47, %v201, %v200
    %v205 = vsel %vm43, %v202, %v204
    %v206 = vsel %vm49, %v203, %v205
    %v208 = vadd.f32 %v35, %v206
    %vm209 = vcmask 27648
    %210 = vst.msk [vmem:[#allocation5] sm:$0xf] %vm209, %v208
    %v211 = vld [vmem:[%s2] sm:$0xf]
    %212 = vst [vmem:[#allocation1] ss:$2 sm:$0xff] %v33
    %s213 = scalar_lea.vmem [#allocation1], 16
    %214 = vst [vmem:[%s213] ss:$2 sm:$0xff] %v34
    %v215 = vld.sshfl [vmem:[#allocation1] sm:$0xff pattern:$0x75316420]
    %v216 = vld.sshfl [vmem:[#allocation1 + $0x8] sm:$0xff pattern:$0x75316420]
    %v217 = vld.sshfl [vmem:[#allocation1 + $0x10] sm:$0xff pattern:$0x75316420]
    %v218 = vld.sshfl [vmem:[#allocation1 + $0x18] sm:$0xff pattern:$0x75316420]
    %v223 = vsel %vm157, %v215, 0.0
    %v224 = vsel %vm157, %v216, 0.0
    %v225 = vadd.f32 %v223, %v224
    %v226 = vsel %vm157, %v217, 0.0
    %v227 = vadd.f32 %v225, %v226
    %v228 = vsel %vm157, %v218, 0.0
    %v229 = vadd.f32 %v227, %v228
    %230 = vadd.xlane.f32.xlu0 %v229
    %v231 = vpop.xlane.xlu0 %230
    %v232 = vadd.f32 %v211, %v231
    %vm233 = vcmask 3072
    %234 = vst.msk [vmem:[%s2] sm:$0xf] %vm233, %v232
    // Predicated region
    $region14: #{tpu_custom_call.1} parent=1 // pred_check
      _
    $region15: #{tpu_custom_call.1} parent=1 // pred_check_branch
      %236 = sbr.rel (0) target = $region17
    $region16: #{tpu_custom_call.1} parent=1 // pred_region
      %238 = vsyncadd [#allocation4], 0
      %s240 = sshll.u32 [#allocation5], 4
      %s241 = int_to_ptr.vmem [resolvable:$true] %s240
      %s242 = sshll.u32 %s1, 4
      %s243 = int_to_ptr.hbm [resolvable:$true] %s242
      %245 = dma.vmem_to_hbm [thread:$0]  %s241, 64, %s243, [#allocation4]
    $region17: #{tpu_custom_call.1} parent=1 // pred_fallthru
      _
    // Predicated region
    $region18: #{tpu_custom_call.1} parent=1 // pred_check
      _
    $region19: #{tpu_custom_call.1} parent=1 // pred_check_branch
      %247 = sbr.rel (0) target = $region21
    $region20: #{tpu_custom_call.1} parent=1 // pred_region
      _
    $region21: #{tpu_custom_call.1} parent=1 // pred_fallthru
      _
    // Predicated region
    $region22: #{tpu_custom_call.1} parent=1 // pred_check
      _
    $region23: #{tpu_custom_call.1} parent=1 // pred_check_branch
      %249 = sbr.rel (0) target = $region25
    $region24: #{tpu_custom_call.1} parent=1 // pred_region
      %251 = dma.done [#allocation4], 64
    $region25: #{tpu_custom_call.1} parent=1 // pred_fallthru
      _
    // Predicated region
    $region26: #{tpu_custom_call.1} parent=1 // pred_check
      _
    $region27: #{tpu_custom_call.1} parent=1 // pred_check_branch
      %253 = sbr.rel (0) target = $region29
    $region28: #{tpu_custom_call.1} parent=1 // pred_region
      _
    $region29: #{tpu_custom_call.1} parent=1 // pred_fallthru
      _
    %254 = vsyncpa [#allocation3], 1
    %255 = vsyncpa [#allocation4], 1

</llo_original>
